<compile_context>
chip_gen: v7x
topology: tpu7x:2x2x1
jax: 0.10.0
libtpu: 0.0.40
codegen_flags: <defaults>
</compile_context>

<pallas_src>
import math

import jax
import jax.numpy as jnp
from jax.experimental import pallas as pl
from jax.experimental.pallas import tpu as pltpu


def _round_up(x, m):
    return -(-x // m) * m


def _round_down(x, m):
    return (x // m) * m


# ----------------------------- backward kernel -----------------------------
def _revgrad_bwd_kernel(g_ref, scale_ref, o_ref):
    # scale_ref holds (-lamb) as a single f32 scalar in SMEM.  Multiply in f32
    # (safe on every generation; v5e has no bf16 VALU) and cast back on store.
    scale = scale_ref[0]
    o_ref[...] = (g_ref[...].astype(jnp.float32) * scale).astype(o_ref.dtype)


def _vmem_capacity_bytes():
    # Trace-time hardware query; fall back to the smallest per-TC VMEM (v7x).
    try:
        cap = getattr(pltpu.get_tpu_info(), "vmem_capacity_bytes", None)
        if cap:
            return int(cap)
    except Exception:
        pass
    return 64 * 1024 * 1024


def _choose_layout(total):
    """Pick (lanes, rows, padded) so the 2D view is zero-copy whenever possible."""
    if total % 128 == 0:
        # Padding-free: widest lane count (lane-dense stores) dividing total.
        for lanes in (1024, 512, 256, 128):
            if total % lanes == 0:
                return lanes, total // lanes, total
    # TODO(synk): grads whose element count is not a multiple of 128 still take
    # one (<128-element) pad pass + one slice pass; a fully copy-free path would
    # need a bulk-kernel + tail-op stitch that costs more HBM traffic than it saves.
    lanes = 128
    padded = _round_up(total, lanes)
    return lanes, padded // lanes, padded


def _pick_tile_rows(rows, lanes, itemsize):
    """Per-generation tile sizing, derived from VMEM capacity at trace time."""
    sub = max(8, 32 // itemsize)            # sublane unit: 8 f32, 16 bf16, 32 int8
    vmem_cap = _vmem_capacity_bytes()
    # 1 tiled input + 1 tiled output, each double-buffered -> 4 tile-sized VMEM
    # buffers.  Keep them (plus headroom) under min(half physical VMEM, 48 MiB):
    #   v7x (64 MiB)     -> 32 MiB limit, ~6 MiB tiles (~1632 f32 rows @ 1024 lanes)
    #   v5e/v6e (128 MiB) -> 48 MiB limit,  8 MiB tiles (2048 f32 rows @ 1024 lanes)
    vmem_limit = int(min(vmem_cap // 2, 48 * 1024 * 1024))
    tile_bytes = min(8 << 20, vmem_limit // 5)
    max_tile_rows = max(sub, _round_down(tile_bytes // (lanes * itemsize), sub))

    if rows <= max_tile_rows:
        # Single row-block; a block dim equal to the full array dim is always legal.
        return rows, vmem_limit

    tile_rows = max_tile_rows
    # For large grads keep >= 4 grid steps so v7x's two TensorCores and the
    # double-buffered pipeline all have work.
    if -(-rows // tile_rows) < 4:
        tile_rows = max(sub, _round_up(-(-rows // 4), sub))
    return tile_rows, vmem_limit


def _revgrad_bwd_pallas(g, lamb, *, _tile_rows_override=None):
    orig_shape = g.shape
    dtype = g.dtype
    itemsize = jnp.dtype(dtype).itemsize
    total = math.prod(orig_shape) if orig_shape else 1

    lanes, rows, padded = _choose_layout(total)

    g_flat = g.reshape(-1)
    if padded != total:
        g_flat = jnp.pad(g_flat, (0, padded - total))
    g2d = g_flat.reshape(rows, lanes)        # zero-copy bitcast when padded == total

    tile_rows, vmem_limit = _pick_tile_rows(rows, lanes, itemsize)
    if _tile_rows_override is not None:      # used by the self-test below
        tile_rows = _tile_rows_override
    grid = (pl.cdiv(rows, tile_rows),)       # ragged last row-block masked by Pallas

    # Fold the negation into the scalar; keep it in f32 (never quantize to g.dtype).
    neg_lamb = (-jnp.asarray(lamb, dtype=jnp.float32)).reshape((1,))

    out2d = pl.pallas_call(
        _revgrad_bwd_kernel,
        out_shape=jax.ShapeDtypeStruct((rows, lanes), dtype),
        grid_spec=pltpu.PrefetchScalarGridSpec(
            num_scalar_prefetch=0,
            grid=grid,
            in_specs=[
                pl.BlockSpec((tile_rows, lanes), lambda i: (i, 0)),
                pl.BlockSpec(memory_space=pltpu.SMEM),      # -lamb scalar, untiled
            ],
            out_specs=pl.BlockSpec((tile_rows, lanes), lambda i: (i, 0)),
        ),
        # The incoming cotangent is dead after this op: alias it to the output so
        # no second full-size HBM buffer is allocated (XLA copies if it can't alias).
        input_output_aliases={0: 0},
        compiler_params=pltpu.CompilerParams(
            dimension_semantics=("parallel",),   # shard row-blocks across TCs on v7x
            vmem_limit_bytes=vmem_limit,
        ),
        cost_estimate=pl.CostEstimate(
            flops=rows * lanes,
            transcendentals=0,
            bytes_accessed=2 * rows * lanes * itemsize,
        ),
    )(g2d, neg_lamb)

    out_flat = out2d.reshape(-1)
    if padded != total:
        out_flat = out_flat[:total]
    return out_flat.reshape(orig_shape)


# ------------------------------ RevGrad module -----------------------------
@jax.custom_vjp
def rev_grad(x, lamb):
    # Forward is the identity: no kernel, no HBM traffic.
    return x


def _rev_grad_fwd(x, lamb):
    return x, (lamb,)


def _rev_grad_bwd(res, g):
    (lamb,) = res
    # PyTorch returns None for lamb's gradient; lamb is not trainable, so its
    # cotangent here is a zero of matching shape/dtype.
    return _revgrad_bwd_pallas(g, lamb), jnp.zeros_like(lamb)


rev_grad.defvjp(_rev_grad_fwd, _rev_grad_bwd)


class RevGrad:
    """Gradient reversal layer: identity forward, -lamb * grad backward."""

    def __call__(self, input_, lamb):
        return rev_grad(input_, lamb)


# ---------------------------------- main ------------------------------------
if __name__ == "__main__":
    key = jax.random.PRNGKey(0)
    x = jax.random.normal(key, (2, 4, 16, 16), dtype=jnp.float32)  # NCHW
    lamb = jnp.float32(0.7)

    layer = RevGrad()

    # Forward: must be the identity (no Pallas call by design — zero-cost).
    y = jax.block_until_ready(layer(x, lamb))
    assert y.shape == x.shape and y.dtype == x.dtype
    assert bool(jnp.allclose(y, x)), "forward is not identity"

    # Backward: runs the Pallas kernel; gradient must be -lamb * upstream.
    loss_fn = lambda a: jnp.sum(layer(a, lamb) * 2.0)
    g = jax.block_until_ready(jax.grad(loss_fn)(x))
    assert bool(jnp.allclose(g, -2.0 * lamb * jnp.ones_like(x), atol=1e-6)), (
        "backward does not reverse gradient"
    )

    # Exercise the ragged (masked partial last row-block) path that large
    # unaligned grads take, by forcing a small tile: 24 rows, 16-row tiles.
    g_in = jax.random.normal(jax.random.PRNGKey(1), (24, 1024), dtype=jnp.float32)
    g_out = jax.block_until_ready(
        _revgrad_bwd_pallas(g_in, lamb, _tile_rows_override=16)
    )
    assert bool(jnp.allclose(g_out, -lamb * g_in, atol=1e-6)), (
        "partial last-block path is wrong"
    )

    print("KERNEL_OK")
</pallas_src>

<mosaic_0001>
module attributes {stable_mosaic.version = 11 : i64} {
  func.func @_revgrad_bwd_kernel(%arg0: i32, %arg1: memref<2x1024xf32, #tpu.memory_space<vmem>>, %arg2: memref<1xf32, #tpu.memory_space<smem>>, %arg3: memref<2x1024xf32, #tpu.memory_space<vmem>>) attributes {dimension_semantics = [#tpu.dimension_semantics<parallel>], iteration_bounds = array<i64: 1>, scalar_prefetch = 0 : i64, scratch_operands = 0 : i64, tpu.core_type = #tpu.core_type<tc>, window_params = [{transform_indices = @transform_0, window_bounds = array<i64: 2, 1024>}, {transform_indices = @transform_1, window_bounds = array<i64: 1>}, {transform_indices = @transform_2, window_bounds = array<i64: 2, 1024>}]} {
    %c0 = arith.constant 0 : index
    %0 = memref.load %arg2[%c0] : memref<1xf32, #tpu.memory_space<smem>>
    %c0_0 = arith.constant 0 : index
    %c0_1 = arith.constant 0 : index
    %1 = vector.load %arg1[%c0_0, %c0_1] : memref<2x1024xf32, #tpu.memory_space<vmem>>, vector<2x1024xf32>
    %2 = vector.broadcast %0 : f32 to vector<2x1024xf32>
    %3 = arith.mulf %1, %2 : vector<2x1024xf32>
    %c0_2 = arith.constant 0 : index
    %c0_3 = arith.constant 0 : index
    %4 = vector.load %arg3[%c0_2, %c0_3] : memref<2x1024xf32, #tpu.memory_space<vmem>>, vector<2x1024xf32>
    tpu.vector_store %arg3[%c0_2, %c0_3], %3 {strides = array<i32>} : memref<2x1024xf32, #tpu.memory_space<vmem>>, vector<2x1024xf32>,
    return
  }
  func.func @transform_0(%arg0: i32) -> (i32, i32) {
    %c0_i32 = arith.constant 0 : i32
    %c0_i32_0 = arith.constant 0 : i32
    return %arg0, %c0_i32 : i32, i32
  }
  func.func @transform_1(%arg0: i32) -> i32 {
    %c0_i32 = arith.constant 0 : i32
    %c0_i32_0 = arith.constant 0 : i32
    return %c0_i32 : i32
  }
  func.func @transform_2(%arg0: i32) -> (i32, i32) {
    %c0_i32 = arith.constant 0 : i32
    %c0_i32_0 = arith.constant 0 : i32
    return %arg0, %c0_i32 : i32, i32
  }
}

</mosaic_0001>

<llo_original>
// kernel: tpu_custom_call.1
$region0: #{tpu_custom_call.1}
  #allocation0 [shape = 'u32[]', space=smem, size = 0x4, offset = 0x4, fixed_abs, tag = 'smem constant byte address 0x4 - core index']
  #allocation1 [shape = 'u32[144,128]{1,0:T(1,128)}', space=vmem, size = 0x12000, scoped, tag = 'internal scratch']
  #allocation2 [shape = 'f32[1]{0:T(128)S(6)}', space=smem, size = 0x200, scoped, tag = 'scoped memory for tpu_custom_call.1']
  %s0 = inlined_call_operand.hbm [shape: f32[2,1024], index: 0, kind: input, shape index: {}, may-alias: {0,2}]
  %s1 = inlined_call_operand.<no memory space> [shape: f32[1], index: 1, kind: input, shape index: {}]
  %s2 = inlined_call_operand.hbm [shape: f32[2,1024], index: 2, kind: output, shape index: {}, may-alias: {0,2}]
  %s3 = sld [smem:[#allocation0]]
  $region22: #{tpu_custom_call.1} parent=0
    _
  %s5 = ssub.s32 1, %s3
  %s6 = scalar_select 0, %s5, %s3
  %7 = sst [smem:[#allocation2]] %s1
  $region1: #{tpu_custom_call.1} parent=0
    #allocation3 [shape = 'u8[8192]{0}', space=vmem, size = 0x2000, scoped, tag = 'input window, operand 0, single buffered']
    #allocation4 [shape = 's32[1]{0}', space=sflag, size = 0x4, scoped, tag = 'scoped memory for tpu_custom_call.1']
    #allocation5 [shape = 's32[1]{0}', space=sflag, size = 0x4, scoped, tag = 'scoped memory for tpu_custom_call.1']
    #allocation6 [shape = 'u8[8192]{0}', space=vmem, size = 0x2000, scoped, tag = 'output window, operand 0, single buffered']
    %8 = vsyncpa [#allocation4], 0
    %9 = vsyncpa [#allocation5], 0
    // Predicated region
    $region2: #{tpu_custom_call.1} parent=1 // pred_check
      _
    $region3: #{tpu_custom_call.1} parent=1 // pred_check_branch
      %11 = sbr.rel (0) target = $region5
    $region4: #{tpu_custom_call.1} parent=1 // pred_region
      %s13 = ssub.s32 256, 256
      %14 = vsyncadd [#allocation4], %s13
      %s16 = sshll.u32 [#allocation3], 4
      %s17 = int_to_ptr.vmem [resolvable:$true] %s16
      %19 = dma.hbm_to_vmem [thread:$0]  %s0, 256, %s17, [#allocation4]
    $region5: #{tpu_custom_call.1} parent=1 // pred_fallthru
      _
    // Predicated region
    $region6: #{tpu_custom_call.1} parent=1 // pred_check
      _
    $region7: #{tpu_custom_call.1} parent=1 // pred_check_branch
      %21 = sbr.rel (0) target = $region9
    $region8: #{tpu_custom_call.1} parent=1 // pred_region
      _
    $region9: #{tpu_custom_call.1} parent=1 // pred_fallthru
      _
    // Predicated region
    $region10: #{tpu_custom_call.1} parent=1 // pred_check
      _
    $region11: #{tpu_custom_call.1} parent=1 // pred_check_branch
      %23 = sbr.rel (0) target = $region13
    $region12: #{tpu_custom_call.1} parent=1 // pred_region
      %24 = dma.done [#allocation4], 256
    $region13: #{tpu_custom_call.1} parent=1 // pred_fallthru
      _
    %s25 = sld [smem:[#allocation2]]
    %v26 = vld [vmem:[#allocation3] sm:$0xff]
    %v27 = vld [vmem:[#allocation3 + $0x8] sm:$0xff]
    %v28 = vstv %s25
    %v29 = vmul.f32 %v26, %v28
    %v30 = vmul.f32 %v27, %v28
    %31 = vst [vmem:[#allocation6] sm:$0xff] %v29
    %32 = vst [vmem:[#allocation6 + $0x8] sm:$0xff] %v30
    // Predicated region
    $region14: #{tpu_custom_call.1} parent=1 // pred_check
      _
    $region15: #{tpu_custom_call.1} parent=1 // pred_check_branch
      %34 = sbr.rel (0) target = $region17
    $region16: #{tpu_custom_call.1} parent=1 // pred_region
      %s36 = ssub.s32 256, 256
      %37 = vsyncadd [#allocation5], %s36
      %s39 = sshll.u32 [#allocation6], 4
      %s40 = int_to_ptr.vmem [resolvable:$true] %s39
      %42 = dma.vmem_to_hbm [thread:$0]  %s40, 256, %s2, [#allocation5]
    $region17: #{tpu_custom_call.1} parent=1 // pred_fallthru
      _
    // Predicated region
    $region18: #{tpu_custom_call.1} parent=1 // pred_check
      _
    $region19: #{tpu_custom_call.1} parent=1 // pred_check_branch
      %44 = sbr.rel (0) target = $region21
    $region20: #{tpu_custom_call.1} parent=1 // pred_region
      %45 = dma.done [#allocation5], 256
    $region21: #{tpu_custom_call.1} parent=1 // pred_fallthru
      _
    %46 = vsyncpa [#allocation4], 1
    %47 = vsyncpa [#allocation5], 1

</llo_original>
